<compile_context>
chip_gen: v7x
topology: tpu7x:2x2x1
jax: 0.10.0
libtpu: 0.0.40
codegen_flags: <defaults>
</compile_context>

<pallas_src>
import jax
import jax.numpy as jnp
from jax.experimental import pallas as pl
from jax.experimental.pallas import tpu as pltpu

_EPS = 1e-5
_TILE_CAP = 8192  # spatial elements per tile (multiple of 128)


def _choose_tile(hw, cap=_TILE_CAP):
    """Largest multiple of 128 that divides hw (<= cap); fall back to full hw."""
    best = hw
    t = 128
    limit = min(hw, cap)
    while t <= limit:
        if hw % t == 0:
            best = t
        t += 128
    return best


def _conv_relu(x, w):
    """x: (Cin, TILE_M), w: (Cout, Cin) -> relu(w @ x) via VPU broadcast FMAs."""
    cin = x.shape[0]
    y = w[:, 0:1] * x[0:1, :]            # (Cout,1)*(1,TILE_M) -> (Cout,TILE_M)
    for c in range(1, cin):              # static unrolled loop, Cin is tiny
        y = y + w[:, c:c + 1] * x[c:c + 1, :]
    return jnp.maximum(y, 0.0)


def _stats_kernel(x_ref, w_ref, sum_ref, sq_ref):
    # x_ref: (Cin, TILE_M)  w_ref: (Cout, Cin)
    # sum_ref, sq_ref: (Cout, 1) per-tile partial statistics (post-ReLU conv).
    y = _conv_relu(x_ref[...], w_ref[...])
    # cross-lane reductions hit the XLU slot (free relative to loads/VPU here).
    sum_ref[...] = jnp.sum(y, axis=1, keepdims=True)
    sq_ref[...] = jnp.sum(y * y, axis=1, keepdims=True)


def _apply_kernel(x_ref, w_ref, scale_ref, bias_ref, o_ref):
    # Recompute y = relu(W @ x) and apply the folded BatchNorm affine:
    # out = y * scale + bias   (scale = gamma*rsqrt(var+eps), bias = beta - mean*scale)
    y = _conv_relu(x_ref[...], w_ref[...])
    o_ref[...] = y * scale_ref[...] + bias_ref[...]


def compress_block_forward(x_nchw, w_conv, gamma, beta, eps=_EPS):
    """x_nchw: (N, Cin, H, W) f32
       w_conv: (Cout, Cin, 1, 1) f32  (PyTorch conv weight layout)
       gamma, beta: (Cout,) f32
       returns: (N, Cout, H, W) f32  (training-mode BN, batch statistics)
    """
    n, cin, h, w = x_nchw.shape
    cout = w_conv.shape[0]
    hw = h * w
    m_total = n * hw

    tile_m = _choose_tile(hw)
    n_m = hw // tile_m

    # Free reshapes only -- no transposes through HBM.
    x_view = x_nchw.reshape(n, cin, hw)
    w_mat = w_conv.reshape(cout, cin)

    x_spec = pl.BlockSpec((None, cin, tile_m), lambda i, j: (i, 0, j))
    w_spec = pl.BlockSpec((cout, cin), lambda i, j: (0, 0))
    part_spec = pl.BlockSpec((None, None, cout, 1), lambda i, j: (i, j, 0, 0))

    conv_flops = 2 * m_total * cin * cout + m_total * cout  # FMAs + ReLU

    # ---- Pass 1: per-tile per-channel sum / sum-of-squares of relu(conv(x)) ----
    sums, sqs = pl.pallas_call(
        _stats_kernel,
        grid=(n, n_m),
        in_specs=[x_spec, w_spec],
        out_specs=(part_spec, part_spec),
        out_shape=(
            jax.ShapeDtypeStruct((n, n_m, cout, 1), jnp.float32),
            jax.ShapeDtypeStruct((n, n_m, cout, 1), jnp.float32),
        ),
        compiler_params=pltpu.CompilerParams(
            dimension_semantics=("parallel", "parallel")),
        cost_estimate=pl.CostEstimate(
            flops=conv_flops + 3 * m_total * cout,
            transcendentals=0,
            bytes_accessed=4 * (m_total * cin + 2 * n * n_m * cout)),
    )(x_view, w_mat)

    # ---- Tiny reduction + folded BN coefficients (Cout elements, plain XLA) ----
    s_tot = jnp.sum(sums, axis=(0, 1))[:, 0]     # (Cout,)
    ss_tot = jnp.sum(sqs, axis=(0, 1))[:, 0]     # (Cout,)
    inv_m = 1.0 / float(m_total)
    mean = s_tot * inv_m
    var = jnp.maximum(ss_tot * inv_m - mean * mean, 0.0)   # biased variance (PyTorch norm)
    scale = gamma * jax.lax.rsqrt(var + eps)
    bias = beta - mean * scale
    scale2 = scale.reshape(cout, 1).astype(jnp.float32)
    bias2 = bias.reshape(cout, 1).astype(jnp.float32)

    sb_spec = pl.BlockSpec((cout, 1), lambda i, j: (0, 0))
    out_spec = pl.BlockSpec((None, cout, tile_m), lambda i, j: (i, 0, j))

    # ---- Pass 2: recompute conv+ReLU per tile, apply scale/bias (lane-dense out) ----
    out = pl.pallas_call(
        _apply_kernel,
        grid=(n, n_m),
        in_specs=[x_spec, w_spec, sb_spec, sb_spec],
        out_specs=out_spec,
        out_shape=jax.ShapeDtypeStruct((n, cout, hw), jnp.float32),
        compiler_params=pltpu.CompilerParams(
            dimension_semantics=("parallel", "parallel")),
        cost_estimate=pl.CostEstimate(
            flops=conv_flops + 2 * m_total * cout,
            transcendentals=0,
            bytes_accessed=4 * (m_total * cin + m_total * cout)),
    )(x_view, w_mat, scale2, bias2)

    # TODO(synk): BatchNorm running_mean/running_var buffer updates (training-mode
    # side effect) are not modeled; they do not affect the forward output.
    return out.reshape(n, cout, h, w)


if __name__ == "__main__":
    # Module config: in_channel=4, compress_factor=2.0 -> Cout = int(4*2.0) = 8
    N, CIN, H, W = 2, 4, 16, 16
    COMPRESS_FACTOR = 2.0
    COUT = int(CIN * COMPRESS_FACTOR)

    key = jax.random.PRNGKey(0)
    kx, kw = jax.random.split(key)

    x = jax.random.normal(kx, (N, CIN, H, W), dtype=jnp.float32)
    w_conv = jax.random.normal(kw, (COUT, CIN, 1, 1), dtype=jnp.float32) * 0.1
    gamma = jnp.ones((COUT,), dtype=jnp.float32)   # BatchNorm2d default weight
    beta = jnp.zeros((COUT,), dtype=jnp.float32)   # BatchNorm2d default bias

    out = compress_block_forward(x, w_conv, gamma, beta)
    jax.block_until_ready(out)

    # Pure-JAX reference of the same math (training-mode BN with batch stats).
    x_flat = jnp.transpose(x, (0, 2, 3, 1)).reshape(-1, CIN)
    y_ref = jnp.maximum(x_flat @ jnp.transpose(w_conv[:, :, 0, 0]), 0.0)
    mu = y_ref.mean(axis=0, keepdims=True)
    vr = ((y_ref - mu) ** 2).mean(axis=0, keepdims=True)
    ref = (y_ref - mu) / jnp.sqrt(vr + _EPS) * gamma + beta
    ref = ref.reshape(N, H, W, COUT).transpose(0, 3, 1, 2)
    assert jnp.allclose(out, ref, atol=1e-4, rtol=1e-4), "mismatch vs reference"

    print("KERNEL_OK")
</pallas_src>

<mosaic_0001>
module attributes {stable_mosaic.version = 11 : i64} {
  func.func @_stats_kernel(%arg0: i32, %arg1: i32, %arg2: memref<1x4x256xf32, #tpu.memory_space<vmem>>, %arg3: memref<8x4xf32, #tpu.memory_space<vmem>>, %arg4: memref<1x1x8x1xf32, #tpu.memory_space<vmem>>, %arg5: memref<1x1x8x1xf32, #tpu.memory_space<vmem>>) attributes {dimension_semantics = [#tpu.dimension_semantics<parallel>, #tpu.dimension_semantics<parallel>], iteration_bounds = array<i64: 2, 1>, scalar_prefetch = 0 : i64, scratch_operands = 0 : i64, tpu.core_type = #tpu.core_type<tc>, window_params = [{transform_indices = @transform_0, window_bounds = array<i64: 1, 4, 256>}, {pipeline_mode = #tpu.pipeline_mode<synchronous>, transform_indices = @transform_1, window_bounds = array<i64: 8, 4>}, {transform_indices = @transform_2, window_bounds = array<i64: 1, 1, 8, 1>}, {transform_indices = @transform_3, window_bounds = array<i64: 1, 1, 8, 1>}]} {
    %c0 = arith.constant 0 : index
    %c0_0 = arith.constant 0 : index
    %c0_1 = arith.constant 0 : index
    %0 = vector.load %arg2[%c0, %c0_0, %c0_1] : memref<1x4x256xf32, #tpu.memory_space<vmem>>, vector<1x4x256xf32>
    %1 = vector.shape_cast %0 : vector<1x4x256xf32> to vector<4x256xf32>
    %c0_2 = arith.constant 0 : index
    %c0_3 = arith.constant 0 : index
    %2 = vector.load %arg3[%c0_2, %c0_3] : memref<8x4xf32, #tpu.memory_space<vmem>>, vector<8x4xf32>
    %3 = vector.extract_strided_slice %2 {offsets = [0, 0], sizes = [8, 1], strides = [1, 1]} : vector<8x4xf32> to vector<8x1xf32>
    %4 = vector.extract_strided_slice %1 {offsets = [0, 0], sizes = [1, 256], strides = [1, 1]} : vector<4x256xf32> to vector<1x256xf32>
    %5 = vector.broadcast %3 : vector<8x1xf32> to vector<8x256xf32>
    %6 = vector.broadcast %4 : vector<1x256xf32> to vector<8x256xf32>
    %7 = arith.mulf %5, %6 : vector<8x256xf32>
    %8 = vector.extract_strided_slice %2 {offsets = [0, 1], sizes = [8, 1], strides = [1, 1]} : vector<8x4xf32> to vector<8x1xf32>
    %9 = vector.extract_strided_slice %1 {offsets = [1, 0], sizes = [1, 256], strides = [1, 1]} : vector<4x256xf32> to vector<1x256xf32>
    %10 = vector.broadcast %8 : vector<8x1xf32> to vector<8x256xf32>
    %11 = vector.broadcast %9 : vector<1x256xf32> to vector<8x256xf32>
    %12 = arith.mulf %10, %11 : vector<8x256xf32>
    %13 = arith.addf %7, %12 : vector<8x256xf32>
    %14 = vector.extract_strided_slice %2 {offsets = [0, 2], sizes = [8, 1], strides = [1, 1]} : vector<8x4xf32> to vector<8x1xf32>
    %15 = vector.extract_strided_slice %1 {offsets = [2, 0], sizes = [1, 256], strides = [1, 1]} : vector<4x256xf32> to vector<1x256xf32>
    %16 = vector.broadcast %14 : vector<8x1xf32> to vector<8x256xf32>
    %17 = vector.broadcast %15 : vector<1x256xf32> to vector<8x256xf32>
    %18 = arith.mulf %16, %17 : vector<8x256xf32>
    %19 = arith.addf %13, %18 : vector<8x256xf32>
    %20 = vector.extract_strided_slice %2 {offsets = [0, 3], sizes = [8, 1], strides = [1, 1]} : vector<8x4xf32> to vector<8x1xf32>
    %21 = vector.extract_strided_slice %1 {offsets = [3, 0], sizes = [1, 256], strides = [1, 1]} : vector<4x256xf32> to vector<1x256xf32>
    %22 = vector.broadcast %20 : vector<8x1xf32> to vector<8x256xf32>
    %23 = vector.broadcast %21 : vector<1x256xf32> to vector<8x256xf32>
    %24 = arith.mulf %22, %23 : vector<8x256xf32>
    %25 = arith.addf %19, %24 : vector<8x256xf32>
    %cst = arith.constant 0.000000e+00 : f32
    %26 = vector.broadcast %cst : f32 to vector<8x256xf32>
    %27 = arith.maximumf %25, %26 : vector<8x256xf32>
    %cst_4 = arith.constant dense<0.000000e+00> : vector<8xf32>
    %28 = vector.multi_reduction <add>, %27, %cst_4 [1] : vector<8x256xf32> to vector<8xf32>
    %29 = vector.shape_cast %28 : vector<8xf32> to vector<8x1xf32>
    %c0_5 = arith.constant 0 : index
    %c0_6 = arith.constant 0 : index
    %c0_7 = arith.constant 0 : index
    %c0_8 = arith.constant 0 : index
    %30 = vector.load %arg4[%c0_5, %c0_6, %c0_7, %c0_8] : memref<1x1x8x1xf32, #tpu.memory_space<vmem>>, vector<1x1x8x1xf32>
    %31 = vector.shape_cast %30 : vector<1x1x8x1xf32> to vector<8x1xf32>
    %32 = vector.shape_cast %29 : vector<8x1xf32> to vector<1x1x8x1xf32>
    tpu.vector_store %arg4[%c0_5, %c0_6, %c0_7, %c0_8], %32 {strides = array<i32>} : memref<1x1x8x1xf32, #tpu.memory_space<vmem>>, vector<1x1x8x1xf32>,
    %33 = arith.mulf %27, %27 : vector<8x256xf32>
    %cst_9 = arith.constant dense<0.000000e+00> : vector<8xf32>
    %34 = vector.multi_reduction <add>, %33, %cst_9 [1] : vector<8x256xf32> to vector<8xf32>
    %35 = vector.shape_cast %34 : vector<8xf32> to vector<8x1xf32>
    %c0_10 = arith.constant 0 : index
    %c0_11 = arith.constant 0 : index
    %c0_12 = arith.constant 0 : index
    %c0_13 = arith.constant 0 : index
    %36 = vector.load %arg5[%c0_10, %c0_11, %c0_12, %c0_13] : memref<1x1x8x1xf32, #tpu.memory_space<vmem>>, vector<1x1x8x1xf32>
    %37 = vector.shape_cast %36 : vector<1x1x8x1xf32> to vector<8x1xf32>
    %38 = vector.shape_cast %35 : vector<8x1xf32> to vector<1x1x8x1xf32>
    tpu.vector_store %arg5[%c0_10, %c0_11, %c0_12, %c0_13], %38 {strides = array<i32>} : memref<1x1x8x1xf32, #tpu.memory_space<vmem>>, vector<1x1x8x1xf32>,
    return
  }
  func.func @transform_0(%arg0: i32, %arg1: i32) -> (i32, i32, i32) {
    %c0_i32 = arith.constant 0 : i32
    %c0_i32_0 = arith.constant 0 : i32
    return %arg0, %c0_i32, %arg1 : i32, i32, i32
  }
  func.func @transform_1(%arg0: i32, %arg1: i32) -> (i32, i32) {
    %c0_i32 = arith.constant 0 : i32
    %c0_i32_0 = arith.constant 0 : i32
    %c0_i32_1 = arith.constant 0 : i32
    return %c0_i32, %c0_i32_0 : i32, i32
  }
  func.func @transform_2(%arg0: i32, %arg1: i32) -> (i32, i32, i32, i32) {
    %c0_i32 = arith.constant 0 : i32
    %c0_i32_0 = arith.constant 0 : i32
    %c0_i32_1 = arith.constant 0 : i32
    return %arg0, %arg1, %c0_i32, %c0_i32_0 : i32, i32, i32, i32
  }
  func.func @transform_3(%arg0: i32, %arg1: i32) -> (i32, i32, i32, i32) {
    %c0_i32 = arith.constant 0 : i32
    %c0_i32_0 = arith.constant 0 : i32
    %c0_i32_1 = arith.constant 0 : i32
    return %arg0, %arg1, %c0_i32, %c0_i32_0 : i32, i32, i32, i32
  }
}

</mosaic_0001>

<llo_original>
// kernel: tpu_custom_call.1
$region0: #{tpu_custom_call.1}
  #allocation0 [shape = 'u32[]', space=smem, size = 0x4, offset = 0x4, fixed_abs, tag = 'smem constant byte address 0x4 - core index']
  #allocation1 [shape = 'u32[144,128]{1,0:T(1,128)}', space=vmem, size = 0x12000, scoped, tag = 'internal scratch']
  %s0 = inlined_call_operand.hbm [shape: f32[2,4,256], index: 0, kind: input, shape index: {}]
  %s1 = inlined_call_operand.vmem [shape: f32[8,4], index: 1, kind: input, shape index: {}]
  %s2 = inlined_call_operand.vmem [shape: f32[2,1,8,1], index: 2, kind: output, shape index: {0}]
  %s3 = inlined_call_operand.vmem [shape: f32[2,1,8,1], index: 3, kind: output, shape index: {1}]
  %4 = xla_tuple %s2, %s3
  %s5 = sld [smem:[#allocation0]]
  $region53: #{tpu_custom_call.1} parent=0
    _
  %s7 = ssub.s32 1, %s5
  %s8 = scalar_select 0, %s7, %s5
  $region1: #{tpu_custom_call.1} parent=0
    #allocation2 [shape = 'u8[8192]{0}', space=vmem, size = 0x2000, scoped, tag = 'input window, operand 0']
    #allocation3 [shape = 's32[2]{0}', space=sflag, size = 0x8, scoped, tag = 'scoped memory for tpu_custom_call.1']
    %9 = vsyncpa [#allocation3], 0
    %s10 = scalar_lea.sflag [#allocation3], 1
    %11 = vsyncpa %s10, 0
    loop: start=0, step=1, limit=4
    $region2: #{tpu_custom_call.1} parent=1 // loop_pre_header
      _
    $region3: #{tpu_custom_call.1} parent=1 // loop_header
      %s13 = sphi 0, %s17
      %p14 = scmp.ge.s32.totalorder %s13, 4
      %s20 = sphi 0, %s32
      %s21 = sphi 0, %s28
      %s22 = sphi 0, %s20
      %s23 = sphi 0, %s21
      %s24 = sphi 0, %s22
      %s25 = sphi 0, %s23
      %s37 = sphi 0, %s39
      %s40 = sphi 0, %s37
      %s41 = sphi 0, %s40
      %s57 = sphi 0, %s41
      %s61 = sphi 0, %s61
      %s63 = sphi 0, %s61
      %s64 = sphi 0, %s63
      %s78 = sphi 0, %s64
      %s86 = sphi 0, %s88
      %s89 = sphi 0, %s86
      %s90 = sphi 0, %s89
      %s106 = sphi 0, %s90
      %s114 = sphi 0, %s116
      %s117 = sphi 0, %s114
      %s118 = sphi 0, %s117
      %s134 = sphi 0, %s118
    $region4: #{tpu_custom_call.1} parent=1 // loop_header_branch
      %16 = sbr.rel (%p14) target = $region8
    $region5: #{tpu_custom_call.1} parent=1 // loop_body
      %s18 = ssub.s32 %s13, 1
      %s19 = ssub.s32 %s13, 2
      %s26 = sadd.s32 1, %s21
      %p27 = scmp.ge.s32.totalorder %s26, 1
      %s28 = scalar_select %p27, 0, %s26
      %s29 = sadd.s32 1, %s20
      %s30 = scalar_select %p27, %s29, %s20
      %p31 = scmp.ge.s32.totalorder %s30, 2
      %s32 = scalar_select %p31, 0, %s30
      %s33 = ssub.s32 %s20, %s32
      %s34 = ssub.s32 %s21, %s28
      %s35 = sor.u32 %s33, %s34
      %p36 = scmp.eq.s32.totalorder %s35, 0
      %s38 = sadd.s32 %s37, 1
      %s39 = scalar_select %p36, %s37, %s38
      %p42 = pneg %p36
      %p43 = scmp.eq.s32.totalorder %s13, 1
      %p44 = por %p42, %p43
      %p45 = scmp.ne.s32.totalorder %s37, %s40
      %p46 = scmp.eq.s32.totalorder %s13, 0
      %p47 = por %p45, %p46
      %p48 = scmp.ne.s32.totalorder %s37, %s40
      %p49 = scmp.eq.s32.totalorder %s18, 1
      %p50 = por %p48, %p49
      %p51 = scmp.ne.s32.totalorder %s40, %s41
      %p52 = scmp.eq.s32.totalorder %s18, 0
      %p53 = por %p51, %p52
      %p54 = scmp.ne.s32.totalorder %s40, %s41
      %p55 = scmp.eq.s32.totalorder %s19, 1
      %p56 = por %p54, %p55
      %p58 = scmp.ne.s32.totalorder %s41, %s57
      %p59 = scmp.eq.s32.totalorder %s19, 0
      %p60 = por %p58, %p59
      %s62 = sadd.s32 %s61, 1
      %p65 = scmp.eq.s32.totalorder %s13, 1
      %p66 = scmp.ne.s32.totalorder %s61, %s63
      %p67 = scmp.eq.s32.totalorder %s13, 0
      %p68 = por %p66, %p67
      %p69 = scmp.ne.s32.totalorder %s61, %s63
      %p70 = scmp.eq.s32.totalorder %s18, 1
      %p71 = por %p69, %p70
      %p72 = scmp.ne.s32.totalorder %s63, %s64
      %p73 = scmp.eq.s32.totalorder %s18, 0
      %p74 = por %p72, %p73
      %p75 = scmp.ne.s32.totalorder %s63, %s64
      %p76 = scmp.eq.s32.totalorder %s19, 1
      %p77 = por %p75, %p76
      %p79 = scmp.ne.s32.totalorder %s64, %s78
      %p80 = scmp.eq.s32.totalorder %s19, 0
      %p81 = por %p79, %p80
      %s82 = ssub.s32 %s20, %s32
      %s83 = ssub.s32 %s21, %s28
      %s84 = sor.u32 %s82, %s83
      %p85 = scmp.eq.s32.totalorder %s84, 0
      %s87 = sadd.s32 %s86, 1
      %s88 = scalar_select %p85, %s86, %s87
      %p91 = pneg %p85
      %p92 = scmp.eq.s32.totalorder %s13, 1
      %p93 = por %p91, %p92
      %p94 = scmp.ne.s32.totalorder %s86, %s89
      %p95 = scmp.eq.s32.totalorder %s13, 0
      %p96 = por %p94, %p95
      %p97 = scmp.ne.s32.totalorder %s86, %s89
      %p98 = scmp.eq.s32.totalorder %s18, 1
      %p99 = por %p97, %p98
      %p100 = scmp.ne.s32.totalorder %s89, %s90
      %p101 = scmp.eq.s32.totalorder %s18, 0
      %p102 = por %p100, %p101
      %p103 = scmp.ne.s32.totalorder %s89, %s90
      %p104 = scmp.eq.s32.totalorder %s19, 1
      %p105 = por %p103, %p104
      %p107 = scmp.ne.s32.totalorder %s90, %s106
      %p108 = scmp.eq.s32.totalorder %s19, 0
      %p109 = por %p107, %p108
      %s110 = ssub.s32 %s20, %s32
      %s111 = ssub.s32 %s21, %s28
      %s112 = sor.u32 %s110, %s111
      %p113 = scmp.eq.s32.totalorder %s112, 0
      %s115 = sadd.s32 %s114, 1
      %s116 = scalar_select %p113, %s114, %s115
      %p119 = pneg %p113
      %p120 = scmp.eq.s32.totalorder %s13, 1
      %p121 = por %p119, %p120
      %p122 = scmp.ne.s32.totalorder %s114, %s117
      %p123 = scmp.eq.s32.totalorder %s13, 0
      %p124 = por %p122, %p123
      %p125 = scmp.ne.s32.totalorder %s114, %s117
      %p126 = scmp.eq.s32.totalorder %s18, 1
      %p127 = por %p125, %p126
      %p128 = scmp.ne.s32.totalorder %s117, %s118
      %p129 = scmp.eq.s32.totalorder %s18, 0
      %p130 = por %p128, %p129
      %p131 = scmp.ne.s32.totalorder %s117, %s118
      %p132 = scmp.eq.s32.totalorder %s19, 1
      %p133 = por %p131, %p132
      %p135 = scmp.ne.s32.totalorder %s118, %s134
      %p136 = scmp.eq.s32.totalorder %s19, 0
      %p137 = por %p135, %p136
      %p138 = scmp.le.s32.totalorder 1, %s13
      %p139 = scmp.lt.s32.totalorder %s13, 3
      %p140 = pnand %p138, %p139
      %p141 = pneg %p140
      // Predicated region
      $region9: #{tpu_custom_call.1} parent=5 // pred_check
        _
      $region10: #{tpu_custom_call.1} parent=5 // pred_check_branch
        %143 = sbr.rel (%p140) target = $region12
      $region11: #{tpu_custom_call.1} parent=5 // pred_region
        %s144 = ssub.s32 %s13, 1
        // Predicated region
        $region13: #{tpu_custom_call.1} parent=11 // pred_check
          %p145 = pneg %p74
        $region14: #{tpu_custom_call.1} parent=11 // pred_check_branch
          %147 = sbr.rel (%p145) target = $region16
        $region15: #{tpu_custom_call.1} parent=11 // pred_region
          _
        $region16: #{tpu_custom_call.1} parent=11 // pred_fallthru
          _
      $region12: #{tpu_custom_call.1} parent=5 // pred_fallthru
        _
      %p148 = scmp.lt.s32.totalorder %s13, 2
      // Predicated region
      $region17: #{tpu_custom_call.1} parent=5 // pred_check
        %p149 = pneg %p148
      $region18: #{tpu_custom_call.1} parent=5 // pred_check_branch
        %151 = sbr.rel (%p149) target = $region20
      $region19: #{tpu_custom_call.1} parent=5 // pred_region
        // Predicated region
        $region21: #{tpu_custom_call.1} parent=19 // pred_check
          %p152 = pneg %p47
        $region22: #{tpu_custom_call.1} parent=19 // pred_check_branch
          %154 = sbr.rel (%p152) target = $region24
        $region23: #{tpu_custom_call.1} parent=19 // pred_region
          %s155 = sand.u32 %s37, 1
          %s156 = scalar_lea.sflag [#allocation3], %s155
          %s157 = sand.u32 %s37, 1
          %s158 = smul.addr %s157, 8
          %s159 = scalar_lea.vmem [#allocation2], %s158
          %s160 = smul.u32 2, %s21
          %s162 = ssub.s32 128, 128
          %163 = vsyncadd %s156, %s162
          %s164 = smul.addr %s20, 2
          %s165 = sadd.s32 %s160, %s164
          %s166 = smul.addr %s165, 64
          %s167 = scalar_lea.hbm %s0, %s166
          %s169 = sshll.u32 %s159, 4
          %s170 = int_to_ptr.vmem [resolvable:$true] %s169
          %172 = dma.hbm_to_vmem [thread:$0]  %s167, 128, %s170, %s156
        $region24: #{tpu_custom_call.1} parent=19 // pred_fallthru
          _
      $region20: #{tpu_custom_call.1} parent=5 // pred_fallthru
        _
      %p173 = scmp.le.s32.totalorder 1, %s13
      %p174 = scmp.lt.s32.totalorder %s13, 3
      %p175 = pnand %p173, %p174
      %p176 = pneg %p175
      // Predicated region
      $region25: #{tpu_custom_call.1} parent=5 // pred_check
        _
      $region26: #{tpu_custom_call.1} parent=5 // pred_check_branch
        %178 = sbr.rel (%p175) target = $region28
      $region27: #{tpu_custom_call.1} parent=5 // pred_region
        %s179 = ssub.s32 %s13, 1
        %s180 = sand.u32 %s40, 1
        %s181 = scalar_lea.sflag [#allocation3], %s180
        %s182 = sand.u32 %s40, 1
        %s183 = smul.addr %s182, 8
        %s184 = scalar_lea.vmem [#allocation2], %s183
        // Predicated region
        $region29: #{tpu_custom_call.1} parent=27 // pred_check
          %p185 = pneg %p53
        $region30: #{tpu_custom_call.1} parent=27 // pred_check_branch
          %187 = sbr.rel (%p185) target = $region32
        $region31: #{tpu_custom_call.1} parent=27 // pred_region
          %188 = dma.done %s181, 128
        $region32: #{tpu_custom_call.1} parent=27 // pred_fallthru
          _
        %s189 = sand.u32 %s40, 1
        %s190 = scalar_lea.sflag [#allocation3], %s189
        %s191 = sand.u32 %s40, 1
        %s192 = smul.addr %s191, 8
        %s193 = scalar_lea.vmem [#allocation2], %s192
        %p194 = pneg %p53
        %p195 = pneg %p50
        %p196 = pneg %p74
        %p197 = pneg %p71
        %p198 = pneg %p102
        %p199 = pneg %p99
        %p200 = scmp.lt.s32.totalorder %s22, 1
        %s201 = scalar_select %p200, %s22, 1
        %p202 = scmp.lt.s32.totalorder %s23, 0
        %s203 = scalar_select %p202, %s23, 0
        %s204 = sadd.s32 %s203, %s201
        %s205 = smul.addr %s204, 8
        %s206 = scalar_lea.vmem %s2, %s205
        %p207 = pneg %p130
        %p208 = pneg %p127
        %p209 = scmp.lt.s32.totalorder %s22, 1
        %s210 = scalar_select %p209, %s22, 1
        %p211 = scmp.lt.s32.totalorder %s23, 0
        %s212 = scalar_select %p211, %s23, 0
        %s213 = sadd.s32 %s212, %s210
        %s214 = smul.addr %s213, 8
        %s215 = scalar_lea.vmem %s3, %s214
        %s216 = smul.u32 2, %s23
        %p217 = scmp.lt.s32.totalorder %s22, 1
        %s218 = scalar_select %p217, %s22, 1
        %p219 = scmp.lt.s32.totalorder %s23, 0
        %s220 = scalar_select %p219, %s23, 0
        %s221 = sadd.s32 %s220, %s218
        %s222 = smul.addr %s221, 8
        %s223 = scalar_lea.vmem %s2, %s222
        %p224 = scmp.lt.s32.totalorder %s22, 1
        %s225 = scalar_select %p224, %s22, 1
        %p226 = scmp.lt.s32.totalorder %s23, 0
        %s227 = scalar_select %p226, %s23, 0
        %s228 = sadd.s32 %s227, %s225
        %s229 = smul.addr %s228, 8
        %s230 = scalar_lea.vmem %s3, %s229
        %v231 = vld [vmem:[%s184] sm:$0xff]
        %v232 = vld [vmem:[%s1] sm:$0xff]
        %234 = vset.pattern.permute.xlu0 0
        %235 = vperm.xlu0 %234, %v232
        %v236 = vpop.permute.xlu0 %235
        %v239 = vlaneseq
        %v240 = vshrl.u32 %v239, 7
        %v241 = vsub.s32 0, %v240
        %v242 = vrot.slane %v231, %v241
        %v243 = vlaneseq
        %v244 = vshrl.u32 %v243, 7
        %v245 = vsub.s32 4, %v244
        %v246 = vrot.slane %v231, %v245
        %v249 = vlaneseq
        %v250 = vshrl.u32 %v249, 7
        %v251 = vsub.s32 0, %v250
        %v252 = vrot.slane %v242, %v251
        %v253 = vlaneseq
        %v254 = vshrl.u32 %v253, 7
        %v255 = vsub.s32 0, %v254
        %v256 = vrot.slane %v246, %v255
        %v257 = vmul.f32 %v236, %v252
        %v258 = vmul.f32 %v236, %v256
        %259 = vset.pattern.permute.xlu0 1
        %260 = vperm.xlu0 %259, %v232
        %v261 = vpop.permute.xlu0 %260
        %v263 = vlaneseq
        %v264 = vshrl.u32 %v263, 7
        %v265 = vsub.s32 1, %v264
        %v266 = vrot.slane %v231, %v265
        %v267 = vlaneseq
        %v268 = vshrl.u32 %v267, 7
        %v269 = vsub.s32 5, %v268
        %v270 = vrot.slane %v231, %v269
        %v273 = vlaneseq
        %v274 = vshrl.u32 %v273, 7
        %v275 = vsub.s32 1, %v274
        %v276 = vrot.slane %v266, %v275
        %v277 = vlaneseq
        %v278 = vshrl.u32 %v277, 7
        %v279 = vsub.s32 1, %v278
        %v280 = vrot.slane %v270, %v279
        %v281 = vmul.f32 %v261, %v276
        %v282 = vmul.f32 %v261, %v280
        %v283 = vadd.f32 %v257, %v281
        %v284 = vadd.f32 %v258, %v282
        %285 = vset.pattern.permute.xlu0 2
        %286 = vperm.xlu0 %285, %v232
        %v287 = vpop.permute.xlu0 %286
        %v289 = vlaneseq
        %v290 = vshrl.u32 %v289, 7
        %v291 = vsub.s32 2, %v290
        %v292 = vrot.slane %v231, %v291
        %v293 = vlaneseq
        %v294 = vshrl.u32 %v293, 7
        %v295 = vsub.s32 6, %v294
        %v296 = vrot.slane %v231, %v295
        %v299 = vlaneseq
        %v300 = vshrl.u32 %v299, 7
        %v301 = vsub.s32 2, %v300
        %v302 = vrot.slane %v292, %v301
        %v303 = vlaneseq
        %v304 = vshrl.u32 %v303, 7
        %v305 = vsub.s32 2, %v304
        %v306 = vrot.slane %v296, %v305
        %v307 = vmul.f32 %v287, %v302
        %v308 = vmul.f32 %v287, %v306
        %v309 = vadd.f32 %v283, %v307
        %v310 = vadd.f32 %v284, %v308
        %311 = vset.pattern.permute.xlu0 3
        %312 = vperm.xlu0 %311, %v232
        %v313 = vpop.permute.xlu0 %312
        %v315 = vlaneseq
        %v316 = vshrl.u32 %v315, 7
        %v317 = vsub.s32 3, %v316
        %v318 = vrot.slane %v231, %v317
        %v319 = vlaneseq
        %v320 = vshrl.u32 %v319, 7
        %v321 = vsub.s32 7, %v320
        %v322 = vrot.slane %v231, %v321
        %v325 = vlaneseq
        %v326 = vshrl.u32 %v325, 7
        %v327 = vsub.s32 3, %v326
        %v328 = vrot.slane %v318, %v327
        %v329 = vlaneseq
        %v330 = vshrl.u32 %v329, 7
        %v331 = vsub.s32 3, %v330
        %v332 = vrot.slane %v322, %v331
        %v333 = vmul.f32 %v313, %v328
        %v334 = vmul.f32 %v313, %v332
        %v335 = vadd.f32 %v309, %v333
        %v336 = vadd.f32 %v310, %v334
        %v337 = vmax.f32 %v335, 0.0
        %v338 = vmax.f32 %v336, 0.0
        %v339 = vadd.f32 %v337, %v338
        %340 = vadd.xlane.f32.xlu0 %v339
        %v341 = vpop.xlane.xlu0 %340
        %vm342 = vcmask 7168
        %343 = vst.msk [vmem:[%s223] sm:$0xff] %vm342, %v341
        %v344 = vmul.f32 %v337, %v337
        %v345 = vmul.f32 %v338, %v338
        %v346 = vadd.f32 %v344, %v345
        %347 = vadd.xlane.f32.xlu0 %v346
        %v348 = vpop.xlane.xlu0 %347
        %349 = vst.msk [vmem:[%s230] sm:$0xff] %vm342, %v348
        %p350 = scmp.lt.s32.totalorder %s22, 1
        %s351 = scalar_select %p350, %s22, 1
        %p352 = scmp.lt.s32.totalorder %s23, 0
        %s353 = scalar_select %p352, %s23, 0
        %s354 = sadd.s32 %s353, %s351
        %s355 = smul.addr %s354, 8
        %s356 = scalar_lea.vmem %s2, %s355
        %p357 = scmp.lt.s32.totalorder %s22, 1
        %s358 = scalar_select %p357, %s22, 1
        %p359 = scmp.lt.s32.totalorder %s23, 0
        %s360 = scalar_select %p359, %s23, 0
        %s361 = sadd.s32 %s360, %s358
        %s362 = smul.addr %s361, 8
        %s363 = scalar_lea.vmem %s3, %s362
        // Predicated region
        $region33: #{tpu_custom_call.1} parent=27 // pred_check
          %p364 = pneg %p99
        $region34: #{tpu_custom_call.1} parent=27 // pred_check_branch
          %366 = sbr.rel (%p364) target = $region36
        $region35: #{tpu_custom_call.1} parent=27 // pred_region
          _
        $region36: #{tpu_custom_call.1} parent=27 // pred_fallthru
          _
        // Predicated region
        $region37: #{tpu_custom_call.1} parent=27 // pred_check
          %p367 = pneg %p127
        $region38: #{tpu_custom_call.1} parent=27 // pred_check_branch
          %369 = sbr.rel (%p367) target = $region40
        $region39: #{tpu_custom_call.1} parent=27 // pred_region
          _
        $region40: #{tpu_custom_call.1} parent=27 // pred_fallthru
          _
      $region28: #{tpu_custom_call.1} parent=5 // pred_fallthru
        _
      %p370 = scmp.le.s32.totalorder 2, %s13
      // Predicated region
      $region41: #{tpu_custom_call.1} parent=5 // pred_check
        %p371 = pneg %p370
      $region42: #{tpu_custom_call.1} parent=5 // pred_check_branch
        %373 = sbr.rel (%p371) target = $region44
      $region43: #{tpu_custom_call.1} parent=5 // pred_region
        %s374 = ssub.s32 %s13, 2
        // Predicated region
        $region45: #{tpu_custom_call.1} parent=43 // pred_check
          %p375 = pneg %p105
        $region46: #{tpu_custom_call.1} parent=43 // pred_check_branch
          %377 = sbr.rel (%p375) target = $region48
        $region47: #{tpu_custom_call.1} parent=43 // pred_region
          %p378 = scmp.lt.s32.totalorder %s24, 1
          %s379 = scalar_select %p378, %s24, 1
          %p380 = scmp.lt.s32.totalorder %s25, 0
          %s381 = scalar_select %p380, %s25, 0
          %s382 = sadd.s32 %s381, %s379
          %s383 = smul.addr %s382, 8
          %s384 = scalar_lea.vmem %s2, %s383
        $region48: #{tpu_custom_call.1} parent=43 // pred_fallthru
          _
        // Predicated region
        $region49: #{tpu_custom_call.1} parent=43 // pred_check
          %p385 = pneg %p133
        $region50: #{tpu_custom_call.1} parent=43 // pred_check_branch
          %387 = sbr.rel (%p385) target = $region52
        $region51: #{tpu_custom_call.1} parent=43 // pred_region
          %p388 = scmp.lt.s32.totalorder %s24, 1
          %s389 = scalar_select %p388, %s24, 1
          %p390 = scmp.lt.s32.totalorder %s25, 0
          %s391 = scalar_select %p390, %s25, 0
          %s392 = sadd.s32 %s391, %s389
          %s393 = smul.addr %s392, 8
          %s394 = scalar_lea.vmem %s3, %s393
        $region52: #{tpu_custom_call.1} parent=43 // pred_fallthru
          _
      $region44: #{tpu_custom_call.1} parent=5 // pred_fallthru
        _
    $region6: #{tpu_custom_call.1} parent=1 // loop_footer
      %s17 = sadd.s32 1, %s13
    $region7: #{tpu_custom_call.1} parent=1 // loop_footer_branch
      %12 = sbr.rel target = $region3
    $region8: #{tpu_custom_call.1} parent=1 // loop_exit
      _
    %395 = vsyncpa [#allocation3], 1
    %s396 = scalar_lea.sflag [#allocation3], 1
    %397 = vsyncpa %s396, 1

</llo_original>
